<compile_context>
chip_gen: v6e
topology: v6e:2x2x1
jax: 0.10.0
libtpu: 0.0.40
codegen_flags: <defaults>
</compile_context>

<pallas_src>
import functools

import jax
import jax.numpy as jnp
from jax.experimental import pallas as pl
from jax.experimental.pallas import tpu as pltpu


def _round_up(x, m):
    return (x + m - 1) // m * m


def _wallet_graphsage_kernel(x_ref, w_ref, out_ref, *, in_pad, hidden, num_classes):
    """Fully fused forward for one row-tile of nodes.

    w_ref is the packed weight buffer (rows, hidden):
      rows [0, in_pad)                       : W0 (zero-padded input rows)
      rows [in_pad, in_pad+hidden)           : W1
      rows [.., +hidden)                     : W2
      rows [.., +hidden)                     : Wh1 = [Wc1 | Wr1]
      rows [.., +hidden)                     : Wh2 = blockdiag(Wc2, Wr2), cols zero-padded
      rows [ob, ob+align)  (aligned block)   : b0, b1, b2, bh1, bh2, zero padding
    """
    head_out = num_classes + 1

    o0 = 0
    o1 = o0 + in_pad          # W0 rows end / W1 rows start
    o2 = o1 + hidden          # W2
    o3 = o2 + hidden          # Wh1
    o4 = o3 + hidden          # Wh2
    ob = o4 + hidden          # aligned bias block start

    x = x_ref[...]

    def lin(a, w_lo, w_hi, b_row):
        w = w_ref[w_lo:w_hi, :]
        b = w_ref[b_row:b_row + 1, :]
        # cast activation to the (possibly bf16) weight dtype for the MXU,
        # accumulate and do all elementwise math in f32 (v5e-safe).
        return (
            jnp.dot(a.astype(w_ref.dtype), w, preferred_element_type=jnp.float32)
            + b.astype(jnp.float32)
        )

    # --- SAGE stack ---
    h = jnp.maximum(lin(x, o0, o1, ob + 0), 0.0)          # layer 0, no residual
    h = h + jnp.maximum(lin(h, o1, o2, ob + 1), 0.0)      # layer 1, residual
    h = h + jnp.maximum(lin(h, o2, o3, ob + 2), 0.0)      # layer 2, residual

    # --- fused classifier + risk heads ---
    c = jnp.maximum(lin(h, o3, o4, ob + 3), 0.0)          # (tile, hidden) = [cls_hid | risk_hid]
    head = lin(c, o4, ob, ob + 4)                         # (tile, hidden); cols >= head_out are 0
    # col num_classes is the risk logit -> sigmoid * 100; cols [0,num_classes) are logits
    lane = jax.lax.broadcasted_iota(jnp.int32, head.shape, 1)
    tail = jnp.where(lane == num_classes, jax.nn.sigmoid(head) * 100.0, head)

    # --- single lane-contiguous full-block store: [emb | cls | risk] ---
    slab = jnp.concatenate([h, tail[:, :head_out]], axis=1)
    out_ref[...] = slab.astype(out_ref.dtype)


def _pack_params(params, in_pad, hidden, num_classes, align):
    """Pack all weights/biases into one (rows, hidden) f32 buffer.

    Weight segments are `align`-row aligned (in_pad and hidden are multiples of
    `align`); the 5 bias rows go in their own aligned block at the end, padded
    to `align` rows.
    """
    half = hidden // 2
    head_out = num_classes + 1
    input_dim = params["w0"].shape[0]

    w0p = jnp.zeros((in_pad, hidden), jnp.float32).at[:input_dim].set(params["w0"])

    wh1 = jnp.concatenate([params["wc1"], params["wr1"]], axis=1)      # (hidden, hidden)
    bh1 = jnp.concatenate([params["bc1"], params["br1"]], axis=1)      # (1, hidden)

    wh2 = jnp.zeros((hidden, hidden), jnp.float32)
    wh2 = wh2.at[:half, :num_classes].set(params["wc2"])
    wh2 = wh2.at[half:, num_classes:head_out].set(params["wr2"])
    bh2 = jnp.zeros((1, hidden), jnp.float32)
    bh2 = bh2.at[:, :num_classes].set(params["bc2"])
    bh2 = bh2.at[:, num_classes:head_out].set(params["br2"])

    bias_block = jnp.concatenate(
        [params["b0"], params["b1"], params["b2"], bh1, bh2], axis=0
    )                                                                  # (5, hidden)
    bias_block = jnp.pad(bias_block, ((0, align - bias_block.shape[0] % align
                                       if bias_block.shape[0] % align else 0), (0, 0)))

    pack = jnp.concatenate(
        [w0p, params["w1"], params["w2"], wh1, wh2, bias_block], axis=0
    )
    assert pack.shape[0] % align == 0
    return pack


@functools.partial(jax.jit, static_argnames=("tile_n", "use_bf16", "out_dtype"))
def wallet_graphsage_forward(x, params, *, tile_n=8192, use_bf16=False,
                             out_dtype=jnp.float32):
    """Fused WalletGraphSAGE forward.

    Args:
      x: [N, input_dim] node features (any N; padded internally).
      params: dict of pre-transposed weights (in, out) and (1, out) biases.
      tile_n: row tile (clamped to N). The kernel is HBM/step-overhead bound,
        so pick the biggest tile that fits (4K-16K rows is the sweet spot).
        On v7x keep tile_n ~ N/16 so each TensorCore gets >=4-8 grid steps
        (the "parallel" axis shards across the two cores).
      use_bf16: cast matmul operands to bf16. Fine on v5e/v6e/v7x (bf16-native
        MXU everywhere); elementwise math stays f32.
      out_dtype: dtype of the [emb|cls|risk] writeback slab. bf16 halves the
        dominant HBM writeback bytes; risk_scores lose ~2-3 digits in bf16.
    """
    n, input_dim = x.shape
    hidden = params["w0"].shape[1]
    num_classes = params["wc2"].shape[1]
    head_out = num_classes + 1
    out_w = hidden + head_out

    align = 16 if use_bf16 else 8
    assert hidden % align == 0 and hidden % 2 == 0, (
        "hidden_dim must be a multiple of 8 (16 when use_bf16) and even")
    assert head_out <= hidden, "num_classes + 1 must fit in hidden width"

    in_pad = _round_up(input_dim, align)
    tile = max(align, min(_round_up(tile_n, align), _round_up(n, align)))
    n_pad = _round_up(n, tile)

    xp = x.astype(jnp.float32)
    if n_pad != n or in_pad != input_dim:
        xp = jnp.pad(xp, ((0, n_pad - n), (0, in_pad - input_dim)))

    pack = _pack_params(params, in_pad, hidden, num_classes, align)
    if use_bf16:
        xp = xp.astype(jnp.bfloat16)
        pack = pack.astype(jnp.bfloat16)
    rows = pack.shape[0]

    kernel = functools.partial(
        _wallet_graphsage_kernel,
        in_pad=in_pad, hidden=hidden, num_classes=num_classes,
    )

    out = pl.pallas_call(
        kernel,
        out_shape=jax.ShapeDtypeStruct((n_pad, out_w), out_dtype),
        grid_spec=pl.GridSpec(
            grid=(n_pad // tile,),
            in_specs=[
                pl.BlockSpec((tile, in_pad), lambda i: (i, 0)),   # x row tile
                # grid-invariant packed weights: same block index every step,
                # so the pipeline fetches it once and keeps it resident.
                pl.BlockSpec((rows, hidden), lambda i: (0, 0)),
            ],
            out_specs=pl.BlockSpec((tile, out_w), lambda i: (i, 0)),
        ),
        compiler_params=pltpu.CompilerParams(
            dimension_semantics=("parallel",),
        ),
    )(xp, pack)

    emb = out[:n, :hidden]
    cls = out[:n, hidden:hidden + num_classes]
    risk = out[:n, hidden + num_classes:hidden + num_classes + 1]
    return {"classifications": cls, "risk_scores": risk, "node_embeddings": emb}


def init_params(key, input_dim, hidden_dim, num_classes):
    """Deterministic init mimicking nn.Linear default (U[-1/sqrt(fan_in), +...]).

    Weights are stored pre-transposed as (in, out); biases as (1, out).
    """
    half = hidden_dim // 2

    def linear(key, fan_in, fan_out):
        kw, kb = jax.random.split(key)
        bound = 1.0 / jnp.sqrt(float(fan_in))
        w = jax.random.uniform(kw, (fan_in, fan_out), jnp.float32, -bound, bound)
        b = jax.random.uniform(kb, (1, fan_out), jnp.float32, -bound, bound)
        return w, b

    keys = jax.random.split(key, 7)
    w0, b0 = linear(keys[0], input_dim, hidden_dim)
    w1, b1 = linear(keys[1], hidden_dim, hidden_dim)
    w2, b2 = linear(keys[2], hidden_dim, hidden_dim)
    wc1, bc1 = linear(keys[3], hidden_dim, half)
    wc2, bc2 = linear(keys[4], half, num_classes)
    wr1, br1 = linear(keys[5], hidden_dim, half)
    wr2, br2 = linear(keys[6], half, 1)
    return dict(
        w0=w0, b0=b0, w1=w1, b1=b1, w2=w2, b2=b2,
        wc1=wc1, bc1=bc1, wc2=wc2, bc2=bc2,
        wr1=wr1, br1=br1, wr2=wr2, br2=br2,
    )


def reference_forward(x, p):
    """Pure-JAX reference of the PyTorch forward (eval mode)."""
    h = jax.nn.relu(x @ p["w0"] + p["b0"])
    h = h + jax.nn.relu(h @ p["w1"] + p["b1"])
    h = h + jax.nn.relu(h @ p["w2"] + p["b2"])
    cls = jax.nn.relu(h @ p["wc1"] + p["bc1"]) @ p["wc2"] + p["bc2"]
    risk = jax.nn.sigmoid(jax.nn.relu(h @ p["wr1"] + p["br1"]) @ p["wr2"] + p["br2"]) * 100.0
    return cls, risk, h


if __name__ == "__main__":
    # Small shapes consistent with the module:
    #   N=128 wallet nodes, input_dim=16 features, hidden_dim=32, num_classes=7.
    N, INPUT_DIM, HIDDEN, NUM_CLASSES = 128, 16, 32, 7

    key = jax.random.PRNGKey(0)
    kx, kp = jax.random.split(key)
    x = jax.random.normal(kx, (N, INPUT_DIM), dtype=jnp.float32)
    params = init_params(kp, INPUT_DIM, HIDDEN, NUM_CLASSES)

    # f32 path (tile clamps to N -> grid=1 for this tiny demo).
    out = wallet_graphsage_forward(x, params)
    jax.block_until_ready(out)

    ref_cls, ref_risk, ref_emb = reference_forward(x, params)
    assert jnp.allclose(out["classifications"], ref_cls, atol=1e-4, rtol=1e-4)
    assert jnp.allclose(out["risk_scores"], ref_risk, atol=1e-4, rtol=1e-4)
    assert jnp.allclose(out["node_embeddings"], ref_emb, atol=1e-4, rtol=1e-4)
    assert out["classifications"].shape == (N, NUM_CLASSES)
    assert out["risk_scores"].shape == (N, 1)
    assert out["node_embeddings"].shape == (N, HIDDEN)

    # Non-divisible N + multi-step grid (exercises padding + parallel axis).
    N2 = 100
    x2 = jax.random.normal(jax.random.PRNGKey(1), (N2, INPUT_DIM), dtype=jnp.float32)
    out2 = wallet_graphsage_forward(x2, params, tile_n=64)
    jax.block_until_ready(out2)
    r2_cls, r2_risk, r2_emb = reference_forward(x2, params)
    assert jnp.allclose(out2["classifications"], r2_cls, atol=1e-4, rtol=1e-4)
    assert jnp.allclose(out2["risk_scores"], r2_risk, atol=1e-4, rtol=1e-4)
    assert jnp.allclose(out2["node_embeddings"], r2_emb, atol=1e-4, rtol=1e-4)
    assert out2["classifications"].shape == (N2, NUM_CLASSES)

    # bf16-operand path (valid on v5e/v6e/v7x): verify it compiles/executes
    # (looser numerics, matmuls in bf16, elementwise in f32).
    out_bf16 = wallet_graphsage_forward(x, params, use_bf16=True)
    jax.block_until_ready(out_bf16)

    # bf16 output-slab path (cuts writeback bytes ~2x on the mem-bound kernel).
    out_bf16_slab = wallet_graphsage_forward(x, params, out_dtype=jnp.bfloat16)
    jax.block_until_ready(out_bf16_slab)

    print("KERNEL_OK")
</pallas_src>

<mosaic_0001>
module attributes {stable_mosaic.version = 11 : i64} {
  func.func @_wallet_graphsage_kernel(%arg0: i32, %arg1: memref<128x16xf32, #tpu.memory_space<vmem>>, %arg2: memref<152x32xf32, #tpu.memory_space<vmem>>, %arg3: memref<128x40xf32, #tpu.memory_space<vmem>>) attributes {dimension_semantics = [#tpu.dimension_semantics<parallel>], iteration_bounds = array<i64: 1>, scalar_prefetch = 0 : i64, scratch_operands = 0 : i64, tpu.core_type = #tpu.core_type<tc>, window_params = [{transform_indices = @transform_0, window_bounds = array<i64: 128, 16>}, {pipeline_mode = #tpu.pipeline_mode<synchronous>, transform_indices = @transform_1, window_bounds = array<i64: 152, 32>}, {transform_indices = @transform_2, window_bounds = array<i64: 128, 40>}]} {
    %c0 = arith.constant 0 : index
    %c0_0 = arith.constant 0 : index
    %0 = vector.load %arg1[%c0, %c0_0] : memref<128x16xf32, #tpu.memory_space<vmem>>, vector<128x16xf32>
    %c0_1 = arith.constant 0 : index
    %c0_2 = arith.constant 0 : index
    %1 = vector.load %arg2[%c0_1, %c0_2] : memref<152x32xf32, #tpu.memory_space<vmem>>, vector<16x32xf32>
    %c144 = arith.constant 144 : index
    %c0_3 = arith.constant 0 : index
    %2 = vector.load %arg2[%c144, %c0_3] : memref<152x32xf32, #tpu.memory_space<vmem>>, vector<1x32xf32>
    %cst = arith.constant dense<0.000000e+00> : vector<128x32xf32>
    %3 = tpu.matmul %0, %1, %cst {dimension_numbers = #tpu.dot_dimension_numbers<[1], [0], [0], [1], [0, 0, 1, 1], [], []>} : vector<128x16xf32>, vector<16x32xf32>, vector<128x32xf32> -> vector<128x32xf32>
    %4 = vector.broadcast %2 : vector<1x32xf32> to vector<128x32xf32>
    %5 = arith.addf %3, %4 : vector<128x32xf32>
    %cst_4 = arith.constant 0.000000e+00 : f32
    %6 = vector.broadcast %cst_4 : f32 to vector<128x32xf32>
    %7 = arith.maximumf %5, %6 : vector<128x32xf32>
    %c16 = arith.constant 16 : index
    %c0_5 = arith.constant 0 : index
    %8 = vector.load %arg2[%c16, %c0_5] : memref<152x32xf32, #tpu.memory_space<vmem>>, vector<32x32xf32>
    %c145 = arith.constant 145 : index
    %c0_6 = arith.constant 0 : index
    %9 = vector.load %arg2[%c145, %c0_6] : memref<152x32xf32, #tpu.memory_space<vmem>>, vector<1x32xf32>
    %cst_7 = arith.constant dense<0.000000e+00> : vector<128x32xf32>
    %10 = tpu.matmul %7, %8, %cst_7 {dimension_numbers = #tpu.dot_dimension_numbers<[1], [0], [0], [1], [0, 0, 1, 1], [], []>} : vector<128x32xf32>, vector<32x32xf32>, vector<128x32xf32> -> vector<128x32xf32>
    %11 = vector.broadcast %9 : vector<1x32xf32> to vector<128x32xf32>
    %12 = arith.addf %10, %11 : vector<128x32xf32>
    %cst_8 = arith.constant 0.000000e+00 : f32
    %13 = vector.broadcast %cst_8 : f32 to vector<128x32xf32>
    %14 = arith.maximumf %12, %13 : vector<128x32xf32>
    %15 = arith.addf %7, %14 : vector<128x32xf32>
    %c48 = arith.constant 48 : index
    %c0_9 = arith.constant 0 : index
    %16 = vector.load %arg2[%c48, %c0_9] : memref<152x32xf32, #tpu.memory_space<vmem>>, vector<32x32xf32>
    %c146 = arith.constant 146 : index
    %c0_10 = arith.constant 0 : index
    %17 = vector.load %arg2[%c146, %c0_10] : memref<152x32xf32, #tpu.memory_space<vmem>>, vector<1x32xf32>
    %cst_11 = arith.constant dense<0.000000e+00> : vector<128x32xf32>
    %18 = tpu.matmul %15, %16, %cst_11 {dimension_numbers = #tpu.dot_dimension_numbers<[1], [0], [0], [1], [0, 0, 1, 1], [], []>} : vector<128x32xf32>, vector<32x32xf32>, vector<128x32xf32> -> vector<128x32xf32>
    %19 = vector.broadcast %17 : vector<1x32xf32> to vector<128x32xf32>
    %20 = arith.addf %18, %19 : vector<128x32xf32>
    %cst_12 = arith.constant 0.000000e+00 : f32
    %21 = vector.broadcast %cst_12 : f32 to vector<128x32xf32>
    %22 = arith.maximumf %20, %21 : vector<128x32xf32>
    %23 = arith.addf %15, %22 : vector<128x32xf32>
    %c80 = arith.constant 80 : index
    %c0_13 = arith.constant 0 : index
    %24 = vector.load %arg2[%c80, %c0_13] : memref<152x32xf32, #tpu.memory_space<vmem>>, vector<32x32xf32>
    %c147 = arith.constant 147 : index
    %c0_14 = arith.constant 0 : index
    %25 = vector.load %arg2[%c147, %c0_14] : memref<152x32xf32, #tpu.memory_space<vmem>>, vector<1x32xf32>
    %cst_15 = arith.constant dense<0.000000e+00> : vector<128x32xf32>
    %26 = tpu.matmul %23, %24, %cst_15 {dimension_numbers = #tpu.dot_dimension_numbers<[1], [0], [0], [1], [0, 0, 1, 1], [], []>} : vector<128x32xf32>, vector<32x32xf32>, vector<128x32xf32> -> vector<128x32xf32>
    %27 = vector.broadcast %25 : vector<1x32xf32> to vector<128x32xf32>
    %28 = arith.addf %26, %27 : vector<128x32xf32>
    %cst_16 = arith.constant 0.000000e+00 : f32
    %29 = vector.broadcast %cst_16 : f32 to vector<128x32xf32>
    %30 = arith.maximumf %28, %29 : vector<128x32xf32>
    %c112 = arith.constant 112 : index
    %c0_17 = arith.constant 0 : index
    %31 = vector.load %arg2[%c112, %c0_17] : memref<152x32xf32, #tpu.memory_space<vmem>>, vector<32x32xf32>
    %c148 = arith.constant 148 : index
    %c0_18 = arith.constant 0 : index
    %32 = vector.load %arg2[%c148, %c0_18] : memref<152x32xf32, #tpu.memory_space<vmem>>, vector<1x32xf32>
    %cst_19 = arith.constant dense<0.000000e+00> : vector<128x32xf32>
    %33 = tpu.matmul %30, %31, %cst_19 {dimension_numbers = #tpu.dot_dimension_numbers<[1], [0], [0], [1], [0, 0, 1, 1], [], []>} : vector<128x32xf32>, vector<32x32xf32>, vector<128x32xf32> -> vector<128x32xf32>
    %34 = vector.broadcast %32 : vector<1x32xf32> to vector<128x32xf32>
    %35 = arith.addf %33, %34 : vector<128x32xf32>
    %36 = tpu.iota {dimensions = array<i32: 1>} : vector<128x32xi32>
    %c7_i32 = arith.constant 7 : i32
    %37 = vector.broadcast %c7_i32 : i32 to vector<128x32xi32>
    %38 = arith.cmpi eq, %36, %37 : vector<128x32xi32>
    %39 = arith.negf %35 : vector<128x32xf32>
    %40 = math.exp %39 : vector<128x32xf32>
    %cst_20 = arith.constant 1.000000e+00 : f32
    %41 = vector.broadcast %cst_20 : f32 to vector<128x32xf32>
    %42 = arith.addf %41, %40 : vector<128x32xf32>
    %43 = arith.divf %41, %42 : vector<128x32xf32>
    %cst_21 = arith.constant 1.000000e+02 : f32
    %44 = vector.broadcast %cst_21 : f32 to vector<128x32xf32>
    %45 = arith.mulf %43, %44 : vector<128x32xf32>
    %46 = arith.select %38, %45, %35 : vector<128x32xi1>, vector<128x32xf32>
    %47 = vector.extract_strided_slice %46 {offsets = [0, 0], sizes = [128, 8], strides = [1, 1]} : vector<128x32xf32> to vector<128x8xf32>
    %48 = tpu.concatenate %23, %47 in 1 : vector<128x32xf32>, vector<128x8xf32> -> vector<128x40xf32>
    %c0_22 = arith.constant 0 : index
    %c0_23 = arith.constant 0 : index
    %49 = vector.load %arg3[%c0_22, %c0_23] : memref<128x40xf32, #tpu.memory_space<vmem>>, vector<128x40xf32>
    tpu.vector_store %arg3[%c0_22, %c0_23], %48 {strides = array<i32>} : memref<128x40xf32, #tpu.memory_space<vmem>>, vector<128x40xf32>,
    return
  }
  func.func @transform_0(%arg0: i32) -> (i32, i32) {
    %c0_i32 = arith.constant 0 : i32
    %c0_i32_0 = arith.constant 0 : i32
    return %arg0, %c0_i32 : i32, i32
  }
  func.func @transform_1(%arg0: i32) -> (i32, i32) {
    %c0_i32 = arith.constant 0 : i32
    %c0_i32_0 = arith.constant 0 : i32
    %c0_i32_1 = arith.constant 0 : i32
    return %c0_i32, %c0_i32_0 : i32, i32
  }
  func.func @transform_2(%arg0: i32) -> (i32, i32) {
    %c0_i32 = arith.constant 0 : i32
    %c0_i32_0 = arith.constant 0 : i32
    return %arg0, %c0_i32 : i32, i32
  }
}

</mosaic_0001>

<llo_original>
// kernel: wallet_graphsage_forward.1
$region0: #{wallet_graphsage_forward.1}
  #allocation0 [shape = 'u32[]', space=smem, size = 0x4, offset = 0x4, fixed_abs, tag = 'smem constant byte address 0x4 - core index']
  #allocation1 [shape = 'u32[144,128]{1,0:T(1,128)}', space=vmem, size = 0x12000, scoped, tag = 'internal scratch']
  %s0 = inlined_call_operand.vmem [shape: f32[128,16], index: 0, kind: input, shape index: {}]
  %s1 = inlined_call_operand.vmem [shape: f32[152,32], index: 1, kind: input, shape index: {}]
  %s2 = inlined_call_operand.vmem [shape: f32[128,40], index: 2, kind: output, shape index: {}]
  %s3 = sld [smem:[#allocation0]]
  $region18: #{wallet_graphsage_forward.1} parent=0
    _
  %s5 = ssub.s32 1, %s3
  %s6 = scalar_select 0, %s5, %s3
  // Predicated region
  $region2: #{wallet_graphsage_forward.1} parent=0 // pred_check
    _
  $region3: #{wallet_graphsage_forward.1} parent=0 // pred_check_branch
    %8 = sbr.rel (0) target = $region5
  $region4: #{wallet_graphsage_forward.1} parent=0 // pred_region
    _
  $region5: #{wallet_graphsage_forward.1} parent=0 // pred_fallthru
    _
  // Predicated region
  $region6: #{wallet_graphsage_forward.1} parent=0 // pred_check
    _
  $region7: #{wallet_graphsage_forward.1} parent=0 // pred_check_branch
    %10 = sbr.rel (0) target = $region9
  $region8: #{wallet_graphsage_forward.1} parent=0 // pred_region
    _
  $region9: #{wallet_graphsage_forward.1} parent=0 // pred_fallthru
    _
  %v11 = vld [vmem:[%s0] sm:$0xff]
  %v12 = vld [vmem:[%s0 + $0x8] sm:$0xff]
  %v13 = vld [vmem:[%s0 + $0x10] sm:$0xff]
  %v14 = vld [vmem:[%s0 + $0x18] sm:$0xff]
  %v15 = vld [vmem:[%s0 + $0x20] sm:$0xff]
  %v16 = vld [vmem:[%s0 + $0x28] sm:$0xff]
  %v17 = vld [vmem:[%s0 + $0x30] sm:$0xff]
  %v18 = vld [vmem:[%s0 + $0x38] sm:$0xff]
  %v19 = vld [vmem:[%s0 + $0x40] sm:$0xff]
  %v20 = vld [vmem:[%s0 + $0x48] sm:$0xff]
  %v21 = vld [vmem:[%s0 + $0x50] sm:$0xff]
  %v22 = vld [vmem:[%s0 + $0x58] sm:$0xff]
  %v23 = vld [vmem:[%s0 + $0x60] sm:$0xff]
  %v24 = vld [vmem:[%s0 + $0x68] sm:$0xff]
  %v25 = vld [vmem:[%s0 + $0x70] sm:$0xff]
  %v26 = vld [vmem:[%s0 + $0x78] sm:$0xff]
  %v27 = vld [vmem:[%s1] sm:$0xff]
  %v28 = vld [vmem:[%s1 + $0x8] sm:$0xff]
  %v29 = vld [vmem:[%s1 + $0x90] sm:$0x1]
  %v30 = vlaneseq
  %v31 = vshrl.u32 %v30, 7
  %v32 = vsub.s32 0, %v31
  %v33 = vrot.slane %v29, %v32
  %vm34 = vcmask 130048
  %v36 = vsel %vm34, %v11, 0
  %v39 = vsel %vm34, %v12, 0
  %v42 = vsel %vm34, %v13, 0
  %v45 = vsel %vm34, %v14, 0
  %v48 = vsel %vm34, %v15, 0
  %v51 = vsel %vm34, %v16, 0
  %v54 = vsel %vm34, %v17, 0
  %v57 = vsel %vm34, %v18, 0
  %v60 = vsel %vm34, %v19, 0
  %v63 = vsel %vm34, %v20, 0
  %v66 = vsel %vm34, %v21, 0
  %v69 = vsel %vm34, %v22, 0
  %v72 = vsel %vm34, %v23, 0
  %v75 = vsel %vm34, %v24, 0
  %v78 = vsel %vm34, %v25, 0
  %v81 = vsel %vm34, %v26, 0
  %83 = vmatprep.subr.mxu0 0.0
  %84 = vmatpush1.msra.mxu0 0.0
  %85 = vmatprep.subr.mxu0 0.0
  %86 = vmatpush1.msra.mxu0 0.0
  %87 = vmatprep.subr.mxu0 0.0
  %88 = vmatpush1.msra.mxu0 0.0
  %89 = vmatprep.subr.mxu0 0.0
  %90 = vmatpush1.msra.mxu0 0.0
  %91 = vmatprep.subr.mxu0 0.0
  %92 = vmatpush1.msra.mxu0 0.0
  %93 = vmatprep.subr.mxu0 0.0
  %94 = vmatpush1.msra.mxu0 0.0
  %95 = vmatprep.subr.mxu0 0.0
  %96 = vmatpush1.msra.mxu0 0.0
  %97 = vmatprep.subr.mxu0 0.0
  %98 = vmatpush1.msra.mxu0 0.0
  %99 = vmatprep.subr.mxu0 0.0
  %100 = vmatpush1.msra.mxu0 0.0
  %101 = vmatprep.subr.mxu0 0.0
  %102 = vmatpush1.msra.mxu0 0.0
  %103 = vmatprep.subr.mxu0 0.0
  %104 = vmatpush1.msra.mxu0 0.0
  %105 = vmatprep.subr.mxu0 0.0
  %106 = vmatpush1.msra.mxu0 0.0
  %107 = vmatprep.subr.mxu0 0.0
  %108 = vmatpush1.msra.mxu0 0.0
  %109 = vmatprep.subr.mxu0 0.0
  %110 = vmatpush1.msra.mxu0 0.0
  %111 = vmatprep.subr.mxu0 0.0
  %112 = vmatpush1.msra.mxu0 %v28
  %113 = vmatprep.subr.mxu0 0.0
  %114 = vmatpush1.msra.mxu0 %v27
  %115 = vmatprep.subr.mxu0 0.0
  %116 = vmatpush2.msra.mxu0 0.0
  %117 = vmatprep.subr.mxu0 0.0
  %118 = vmatpush2.msra.mxu0 0.0
  %119 = vmatprep.subr.mxu0 0.0
  %120 = vmatpush2.msra.mxu0 0.0
  %121 = vmatprep.subr.mxu0 0.0
  %122 = vmatpush2.msra.mxu0 0.0
  %123 = vmatprep.subr.mxu0 0.0
  %124 = vmatpush2.msra.mxu0 0.0
  %125 = vmatprep.subr.mxu0 0.0
  %126 = vmatpush2.msra.mxu0 0.0
  %127 = vmatprep.subr.mxu0 0.0
  %128 = vmatpush2.msra.mxu0 0.0
  %129 = vmatprep.subr.mxu0 0.0
  %130 = vmatpush2.msra.mxu0 0.0
  %131 = vmatprep.subr.mxu0 0.0
  %132 = vmatpush2.msra.mxu0 0.0
  %133 = vmatprep.subr.mxu0 0.0
  %134 = vmatpush2.msra.mxu0 0.0
  %135 = vmatprep.subr.mxu0 0.0
  %136 = vmatpush2.msra.mxu0 0.0
  %137 = vmatprep.subr.mxu0 0.0
  %138 = vmatpush2.msra.mxu0 0.0
  %139 = vmatprep.subr.mxu0 0.0
  %140 = vmatpush2.msra.mxu0 0.0
  %141 = vmatprep.subr.mxu0 0.0
  %142 = vmatpush2.msra.mxu0 0.0
  %143 = vmatprep.subr.mxu0 0.0
  %144 = vmatpush2.msra.mxu0 0.0
  %145 = vmatprep.subr.mxu0 0.0
  %146 = vmatpush2.msra.mxu0 0.0
  %147 = vmatprep.mubr.f32.mxu0 0.0
  %148 = vmatmul.mubr.f32.gmra.mxu0 %v36
  %v149 = vpop.f32.mrf.mxu0
  %v150 = vadd.f32 %v33, %v149
  %v151 = vpop.f32.mrf.mxu0
  %152 = vmatprep.mubr.f32.mxu0 0.0
  %153 = vmatmul.mubr.f32.gmra.mxu0 %v39
  %v154 = vpop.f32.mrf.mxu0
  %v155 = vadd.f32 %v33, %v154
  %v156 = vpop.f32.mrf.mxu0
  %157 = vmatprep.mubr.f32.mxu0 0.0
  %158 = vmatmul.mubr.f32.gmra.mxu0 %v42
  %v159 = vpop.f32.mrf.mxu0
  %v160 = vadd.f32 %v33, %v159
  %v161 = vpop.f32.mrf.mxu0
  %162 = vmatprep.mubr.f32.mxu0 0.0
  %163 = vmatmul.mubr.f32.gmra.mxu0 %v45
  %v164 = vpop.f32.mrf.mxu0
  %v165 = vadd.f32 %v33, %v164
  %v166 = vpop.f32.mrf.mxu0
  %167 = vmatprep.mubr.f32.mxu0 0.0
  %168 = vmatmul.mubr.f32.gmra.mxu0 %v48
  %v169 = vpop.f32.mrf.mxu0
  %v170 = vadd.f32 %v33, %v169
  %v171 = vpop.f32.mrf.mxu0
  %172 = vmatprep.mubr.f32.mxu0 0.0
  %173 = vmatmul.mubr.f32.gmra.mxu0 %v51
  %v174 = vpop.f32.mrf.mxu0
  %v175 = vadd.f32 %v33, %v174
  %v176 = vpop.f32.mrf.mxu0
  %177 = vmatprep.mubr.f32.mxu0 0.0
  %178 = vmatmul.mubr.f32.gmra.mxu0 %v54
  %v179 = vpop.f32.mrf.mxu0
  %v180 = vadd.f32 %v33, %v179
  %v181 = vpop.f32.mrf.mxu0
  %182 = vmatprep.mubr.f32.mxu0 0.0
  %183 = vmatmul.mubr.f32.gmra.mxu0 %v57
  %v184 = vpop.f32.mrf.mxu0
  %v185 = vadd.f32 %v33, %v184
  %v186 = vpop.f32.mrf.mxu0
  %187 = vmatprep.mubr.f32.mxu0 0.0
  %188 = vmatmul.mubr.f32.gmra.mxu0 %v60
  %v189 = vpop.f32.mrf.mxu0
  %v190 = vadd.f32 %v33, %v189
  %v191 = vpop.f32.mrf.mxu0
  %192 = vmatprep.mubr.f32.mxu0 0.0
  %193 = vmatmul.mubr.f32.gmra.mxu0 %v63
  %v194 = vpop.f32.mrf.mxu0
  %v195 = vadd.f32 %v33, %v194
  %v196 = vpop.f32.mrf.mxu0
  %197 = vmatprep.mubr.f32.mxu0 0.0
  %198 = vmatmul.mubr.f32.gmra.mxu0 %v66
  %v199 = vpop.f32.mrf.mxu0
  %v200 = vadd.f32 %v33, %v199
  %v201 = vpop.f32.mrf.mxu0
  %202 = vmatprep.mubr.f32.mxu0 0.0
  %203 = vmatmul.mubr.f32.gmra.mxu0 %v69
  %v204 = vpop.f32.mrf.mxu0
  %v205 = vadd.f32 %v33, %v204
  %v206 = vpop.f32.mrf.mxu0
  %207 = vmatprep.mubr.f32.mxu0 0.0
  %208 = vmatmul.mubr.f32.gmra.mxu0 %v72
  %v209 = vpop.f32.mrf.mxu0
  %v210 = vadd.f32 %v33, %v209
  %v211 = vpop.f32.mrf.mxu0
  %212 = vmatprep.mubr.f32.mxu0 0.0
  %213 = vmatmul.mubr.f32.gmra.mxu0 %v75
  %v214 = vpop.f32.mrf.mxu0
  %v215 = vadd.f32 %v33, %v214
  %v216 = vpop.f32.mrf.mxu0
  %217 = vmatprep.mubr.f32.mxu0 0.0
  %218 = vmatmul.mubr.f32.gmra.mxu0 %v78
  %v219 = vpop.f32.mrf.mxu0
  %v220 = vadd.f32 %v33, %v219
  %v221 = vpop.f32.mrf.mxu0
  %222 = vmatprep.mubr.f32.mxu0 0.0
  %223 = vmatmul.mubr.f32.gmra.mxu0 %v81
  %v224 = vpop.f32.mrf.mxu0
  %v225 = vadd.f32 %v33, %v224
  %v226 = vpop.f32.mrf.mxu0
  %227 = vdwg.mxu0
  %v228 = vmax.f32 %v150, 0.0
  %v229 = vmax.f32 %v155, 0.0
  %v230 = vmax.f32 %v160, 0.0
  %v231 = vmax.f32 %v165, 0.0
  %v232 = vmax.f32 %v170, 0.0
  %v233 = vmax.f32 %v175, 0.0
  %v234 = vmax.f32 %v180, 0.0
  %v235 = vmax.f32 %v185, 0.0
  %v236 = vmax.f32 %v190, 0.0
  %v237 = vmax.f32 %v195, 0.0
  %v238 = vmax.f32 %v200, 0.0
  %v239 = vmax.f32 %v205, 0.0
  %v240 = vmax.f32 %v210, 0.0
  %v241 = vmax.f32 %v215, 0.0
  %v242 = vmax.f32 %v220, 0.0
  %v243 = vmax.f32 %v225, 0.0
  %v244 = vld [vmem:[%s1 + $0x10] sm:$0xff]
  %v245 = vld [vmem:[%s1 + $0x18] sm:$0xff]
  %v246 = vld [vmem:[%s1 + $0x20] sm:$0xff]
  %v247 = vld [vmem:[%s1 + $0x28] sm:$0xff]
  %v248 = vld [vmem:[%s1 + $0x91] sm:$0x1]
  %v249 = vlaneseq
  %v250 = vshrl.u32 %v249, 7
  %v251 = vsub.s32 0, %v250
  %v252 = vrot.slane %v248, %v251
  %vm253 = vcmask 261120
  %v255 = vsel %vm253, %v228, 0
  %v258 = vsel %vm253, %v229, 0
  %v261 = vsel %vm253, %v230, 0
  %v264 = vsel %vm253, %v231, 0
  %v267 = vsel %vm253, %v232, 0
  %v270 = vsel %vm253, %v233, 0
  %v273 = vsel %vm253, %v234, 0
  %v276 = vsel %vm253, %v235, 0
  %v279 = vsel %vm253, %v236, 0
  %v282 = vsel %vm253, %v237, 0
  %v285 = vsel %vm253, %v238, 0
  %v288 = vsel %vm253, %v239, 0
  %v291 = vsel %vm253, %v240, 0
  %v294 = vsel %vm253, %v241, 0
  %v297 = vsel %vm253, %v242, 0
  %v300 = vsel %vm253, %v243, 0
  %302 = vmatprep.subr.mxu0 0.0
  %303 = vmatpush1.msra.mxu0 0.0
  %304 = vmatprep.subr.mxu0 0.0
  %305 = vmatpush1.msra.mxu0 0.0
  %306 = vmatprep.subr.mxu0 0.0
  %307 = vmatpush1.msra.mxu0 0.0
  %308 = vmatprep.subr.mxu0 0.0
  %309 = vmatpush1.msra.mxu0 0.0
  %310 = vmatprep.subr.mxu0 0.0
  %311 = vmatpush1.msra.mxu0 0.0
  %312 = vmatprep.subr.mxu0 0.0
  %313 = vmatpush1.msra.mxu0 0.0
  %314 = vmatprep.subr.mxu0 0.0
  %315 = vmatpush1.msra.mxu0 0.0
  %316 = vmatprep.subr.mxu0 0.0
  %317 = vmatpush1.msra.mxu0 0.0
  %318 = vmatprep.subr.mxu0 0.0
  %319 = vmatpush1.msra.mxu0 0.0
  %320 = vmatprep.subr.mxu0 0.0
  %321 = vmatpush1.msra.mxu0 0.0
  %322 = vmatprep.subr.mxu0 0.0
  %323 = vmatpush1.msra.mxu0 0.0
  %324 = vmatprep.subr.mxu0 0.0
  %325 = vmatpush1.msra.mxu0 0.0
  %326 = vmatprep.subr.mxu0 0.0
  %327 = vmatpush1.msra.mxu0 %v247
  %328 = vmatprep.subr.mxu0 0.0
  %329 = vmatpush1.msra.mxu0 %v246
  %330 = vmatprep.subr.mxu0 0.0
  %331 = vmatpush1.msra.mxu0 %v245
  %332 = vmatprep.subr.mxu0 0.0
  %333 = vmatpush1.msra.mxu0 %v244
  %334 = vmatprep.subr.mxu0 0.0
  %335 = vmatpush2.msra.mxu0 0.0
  %336 = vmatprep.subr.mxu0 0.0
  %337 = vmatpush2.msra.mxu0 0.0
  %338 = vmatprep.subr.mxu0 0.0
  %339 = vmatpush2.msra.mxu0 0.0
  %340 = vmatprep.subr.mxu0 0.0
  %341 = vmatpush2.msra.mxu0 0.0
  %342 = vmatprep.subr.mxu0 0.0
  %343 = vmatpush2.msra.mxu0 0.0
  %344 = vmatprep.subr.mxu0 0.0
  %345 = vmatpush2.msra.mxu0 0.0
  %346 = vmatprep.subr.mxu0 0.0
  %347 = vmatpush2.msra.mxu0 0.0
  %348 = vmatprep.subr.mxu0 0.0
  %349 = vmatpush2.msra.mxu0 0.0
  %350 = vmatprep.subr.mxu0 0.0
  %351 = vmatpush2.msra.mxu0 0.0
  %352 = vmatprep.subr.mxu0 0.0
  %353 = vmatpush2.msra.mxu0 0.0
  %354 = vmatprep.subr.mxu0 0.0
  %355 = vmatpush2.msra.mxu0 0.0
  %356 = vmatprep.subr.mxu0 0.0
  %357 = vmatpush2.msra.mxu0 0.0
  %358 = vmatprep.subr.mxu0 0.0
  %359 = vmatpush2.msra.mxu0 0.0
  %360 = vmatprep.subr.mxu0 0.0
  %361 = vmatpush2.msra.mxu0 0.0
  %362 = vmatprep.subr.mxu0 0.0
  %363 = vmatpush2.msra.mxu0 0.0
  %364 = vmatprep.subr.mxu0 0.0
  %365 = vmatpush2.msra.mxu0 0.0
  %366 = vmatprep.mubr.f32.mxu0 0.0
  %367 = vmatmul.mubr.f32.gmra.mxu0 %v255
  %v368 = vpop.f32.mrf.mxu0
  %v369 = vadd.f32 %v252, %v368
  %v370 = vpop.f32.mrf.mxu0
  %371 = vmatprep.mubr.f32.mxu0 0.0
  %372 = vmatmul.mubr.f32.gmra.mxu0 %v258
  %v373 = vpop.f32.mrf.mxu0
  %v374 = vadd.f32 %v252, %v373
  %v375 = vpop.f32.mrf.mxu0
  %376 = vmatprep.mubr.f32.mxu0 0.0
  %377 = vmatmul.mubr.f32.gmra.mxu0 %v261
  %v378 = vpop.f32.mrf.mxu0
  %v379 = vadd.f32 %v252, %v378
  %v380 = vpop.f32.mrf.mxu0
  %381 = vmatprep.mubr.f32.mxu0 0.0
  %382 = vmatmul.mubr.f32.gmra.mxu0 %v264
  %v383 = vpop.f32.mrf.mxu0
  %v384 = vadd.f32 %v252, %v383
  %v385 = vpop.f32.mrf.mxu0
  %386 = vmatprep.mubr.f32.mxu0 0.0
  %387 = vmatmul.mubr.f32.gmra.mxu0 %v267
  %v388 = vpop.f32.mrf.mxu0
  %v389 = vadd.f32 %v252, %v388
  %v390 = vpop.f32.mrf.mxu0
  %391 = vmatprep.mubr.f32.mxu0 0.0
  %392 = vmatmul.mubr.f32.gmra.mxu0 %v270
  %v393 = vpop.f32.mrf.mxu0
  %v394 = vadd.f32 %v252, %v393
  %v395 = vpop.f32.mrf.mxu0
  %396 = vmatprep.mubr.f32.mxu0 0.0
  %397 = vmatmul.mubr.f32.gmra.mxu0 %v273
  %v398 = vpop.f32.mrf.mxu0
  %v399 = vadd.f32 %v252, %v398
  %v400 = vpop.f32.mrf.mxu0
  %401 = vmatprep.mubr.f32.mxu0 0.0
  %402 = vmatmul.mubr.f32.gmra.mxu0 %v276
  %v403 = vpop.f32.mrf.mxu0
  %v404 = vadd.f32 %v252, %v403
  %v405 = vpop.f32.mrf.mxu0
  %406 = vmatprep.mubr.f32.mxu0 0.0
  %407 = vmatmul.mubr.f32.gmra.mxu0 %v279
  %v408 = vpop.f32.mrf.mxu0
  %v409 = vadd.f32 %v252, %v408
  %v410 = vpop.f32.mrf.mxu0
  %411 = vmatprep.mubr.f32.mxu0 0.0
  %412 = vmatmul.mubr.f32.gmra.mxu0 %v282
  %v413 = vpop.f32.mrf.mxu0
  %v414 = vadd.f32 %v252, %v413
  %v415 = vpop.f32.mrf.mxu0
  %416 = vmatprep.mubr.f32.mxu0 0.0
  %417 = vmatmul.mubr.f32.gmra.mxu0 %v285
  %v418 = vpop.f32.mrf.mxu0
  %v419 = vadd.f32 %v252, %v418
  %v420 = vpop.f32.mrf.mxu0
  %421 = vmatprep.mubr.f32.mxu0 0.0
  %422 = vmatmul.mubr.f32.gmra.mxu0 %v288
  %v423 = vpop.f32.mrf.mxu0
  %v424 = vadd.f32 %v252, %v423
  %v425 = vpop.f32.mrf.mxu0
  %426 = vmatprep.mubr.f32.mxu0 0.0
  %427 = vmatmul.mubr.f32.gmra.mxu0 %v291
  %v428 = vpop.f32.mrf.mxu0
  %v429 = vadd.f32 %v252, %v428
  %v430 = vpop.f32.mrf.mxu0
  %431 = vmatprep.mubr.f32.mxu0 0.0
  %432 = vmatmul.mubr.f32.gmra.mxu0 %v294
  %v433 = vpop.f32.mrf.mxu0
  %v434 = vadd.f32 %v252, %v433
  %v435 = vpop.f32.mrf.mxu0
  %436 = vmatprep.mubr.f32.mxu0 0.0
  %437 = vmatmul.mubr.f32.gmra.mxu0 %v297
  %v438 = vpop.f32.mrf.mxu0
  %v439 = vadd.f32 %v252, %v438
  %v440 = vpop.f32.mrf.mxu0
  %441 = vmatprep.mubr.f32.mxu0 0.0
  %442 = vmatmul.mubr.f32.gmra.mxu0 %v300
  %v443 = vpop.f32.mrf.mxu0
  %v444 = vadd.f32 %v252, %v443
  %v445 = vpop.f32.mrf.mxu0
  %446 = vdwg.mxu0
  %v447 = vmax.f32 %v369, 0.0
  %v448 = vmax.f32 %v374, 0.0
  %v449 = vmax.f32 %v379, 0.0
  %v450 = vmax.f32 %v384, 0.0
  %v451 = vmax.f32 %v389, 0.0
  %v452 = vmax.f32 %v394, 0.0
  %v453 = vmax.f32 %v399, 0.0
  %v454 = vmax.f32 %v404, 0.0
  %v455 = vmax.f32 %v409, 0.0
  %v456 = vmax.f32 %v414, 0.0
  %v457 = vmax.f32 %v419, 0.0
  %v458 = vmax.f32 %v424, 0.0
  %v459 = vmax.f32 %v429, 0.0
  %v460 = vmax.f32 %v434, 0.0
  %v461 = vmax.f32 %v439, 0.0
  %v462 = vmax.f32 %v444, 0.0
  %v463 = vadd.f32 %v228, %v447
  %v464 = vadd.f32 %v229, %v448
  %v465 = vadd.f32 %v230, %v449
  %v466 = vadd.f32 %v231, %v450
  %v467 = vadd.f32 %v232, %v451
  %v468 = vadd.f32 %v233, %v452
  %v469 = vadd.f32 %v234, %v453
  %v470 = vadd.f32 %v235, %v454
  %v471 = vadd.f32 %v236, %v455
  %v472 = vadd.f32 %v237, %v456
  %v473 = vadd.f32 %v238, %v457
  %v474 = vadd.f32 %v239, %v458
  %v475 = vadd.f32 %v240, %v459
  %v476 = vadd.f32 %v241, %v460
  %v477 = vadd.f32 %v242, %v461
  %v478 = vadd.f32 %v243, %v462
  %v479 = vld [vmem:[%s1 + $0x30] sm:$0xff]
  %v480 = vld [vmem:[%s1 + $0x38] sm:$0xff]
  %v481 = vld [vmem:[%s1 + $0x40] sm:$0xff]
  %v482 = vld [vmem:[%s1 + $0x48] sm:$0xff]
  %v483 = vld [vmem:[%s1 + $0x92] sm:$0x1]
  %v484 = vlaneseq
  %v485 = vshrl.u32 %v484, 7
  %v486 = vsub.s32 0, %v485
  %v487 = vrot.slane %v483, %v486
  %v489 = vsel %vm253, %v463, 0
  %v492 = vsel %vm253, %v464, 0
  %v495 = vsel %vm253, %v465, 0
  %v498 = vsel %vm253, %v466, 0
  %v501 = vsel %vm253, %v467, 0
  %v504 = vsel %vm253, %v468, 0
  %v507 = vsel %vm253, %v469, 0
  %v510 = vsel %vm253, %v470, 0
  %v513 = vsel %vm253, %v471, 0
  %v516 = vsel %vm253, %v472, 0
  %v519 = vsel %vm253, %v473, 0
  %v522 = vsel %vm253, %v474, 0
  %v525 = vsel %vm253, %v475, 0
  %v528 = vsel %vm253, %v476, 0
  %v531 = vsel %vm253, %v477, 0
  %v534 = vsel %vm253, %v478, 0
  %536 = vmatprep.subr.mxu0 0.0
  %537 = vmatpush1.msra.mxu0 0.0
  %538 = vmatprep.subr.mxu0 0.0
  %539 = vmatpush1.msra.mxu0 0.0
  %540 = vmatprep.subr.mxu0 0.0
  %541 = vmatpush1.msra.mxu0 0.0
  %542 = vmatprep.subr.mxu0 0.0
  %543 = vmatpush1.msra.mxu0 0.0
  %544 = vmatprep.subr.mxu0 0.0
  %545 = vmatpush1.msra.mxu0 0.0
  %546 = vmatprep.subr.mxu0 0.0
  %547 = vmatpush1.msra.mxu0 0.0
  %548 = vmatprep.subr.mxu0 0.0
  %549 = vmatpush1.msra.mxu0 0.0
  %550 = vmatprep.subr.mxu0 0.0
  %551 = vmatpush1.msra.mxu0 0.0
  %552 = vmatprep.subr.mxu0 0.0
  %553 = vmatpush1.msra.mxu0 0.0
  %554 = vmatprep.subr.mxu0 0.0
  %555 = vmatpush1.msra.mxu0 0.0
  %556 = vmatprep.subr.mxu0 0.0
  %557 = vmatpush1.msra.mxu0 0.0
  %558 = vmatprep.subr.mxu0 0.0
  %559 = vmatpush1.msra.mxu0 0.0
  %560 = vmatprep.subr.mxu0 0.0
  %561 = vmatpush1.msra.mxu0 %v482
  %562 = vmatprep.subr.mxu0 0.0
  %563 = vmatpush1.msra.mxu0 %v481
  %564 = vmatprep.subr.mxu0 0.0
  %565 = vmatpush1.msra.mxu0 %v480
  %566 = vmatprep.subr.mxu0 0.0
  %567 = vmatpush1.msra.mxu0 %v479
  %568 = vmatprep.subr.mxu0 0.0
  %569 = vmatpush2.msra.mxu0 0.0
  %570 = vmatprep.subr.mxu0 0.0
  %571 = vmatpush2.msra.mxu0 0.0
  %572 = vmatprep.subr.mxu0 0.0
  %573 = vmatpush2.msra.mxu0 0.0
  %574 = vmatprep.subr.mxu0 0.0
  %575 = vmatpush2.msra.mxu0 0.0
  %576 = vmatprep.subr.mxu0 0.0
  %577 = vmatpush2.msra.mxu0 0.0
  %578 = vmatprep.subr.mxu0 0.0
  %579 = vmatpush2.msra.mxu0 0.0
  %580 = vmatprep.subr.mxu0 0.0
  %581 = vmatpush2.msra.mxu0 0.0
  %582 = vmatprep.subr.mxu0 0.0
  %583 = vmatpush2.msra.mxu0 0.0
  %584 = vmatprep.subr.mxu0 0.0
  %585 = vmatpush2.msra.mxu0 0.0
  %586 = vmatprep.subr.mxu0 0.0
  %587 = vmatpush2.msra.mxu0 0.0
  %588 = vmatprep.subr.mxu0 0.0
  %589 = vmatpush2.msra.mxu0 0.0
  %590 = vmatprep.subr.mxu0 0.0
  %591 = vmatpush2.msra.mxu0 0.0
  %592 = vmatprep.subr.mxu0 0.0
  %593 = vmatpush2.msra.mxu0 0.0
  %594 = vmatprep.subr.mxu0 0.0
  %595 = vmatpush2.msra.mxu0 0.0
  %596 = vmatprep.subr.mxu0 0.0
  %597 = vmatpush2.msra.mxu0 0.0
  %598 = vmatprep.subr.mxu0 0.0
  %599 = vmatpush2.msra.mxu0 0.0
  %600 = vmatprep.mubr.f32.mxu0 0.0
  %601 = vmatmul.mubr.f32.gmra.mxu0 %v489
  %v602 = vpop.f32.mrf.mxu0
  %v603 = vadd.f32 %v487, %v602
  %v604 = vpop.f32.mrf.mxu0
  %605 = vmatprep.mubr.f32.mxu0 0.0
  %606 = vmatmul.mubr.f32.gmra.mxu0 %v492
  %v607 = vpop.f32.mrf.mxu0
  %v608 = vadd.f32 %v487, %v607
  %v609 = vpop.f32.mrf.mxu0
  %610 = vmatprep.mubr.f32.mxu0 0.0
  %611 = vmatmul.mubr.f32.gmra.mxu0 %v495
  %v612 = vpop.f32.mrf.mxu0
  %v613 = vadd.f32 %v487, %v612
  %v614 = vpop.f32.mrf.mxu0
  %615 = vmatprep.mubr.f32.mxu0 0.0
  %616 = vmatmul.mubr.f32.gmra.mxu0 %v498
  %v617 = vpop.f32.mrf.mxu0
  %v618 = vadd.f32 %v487, %v617
  %v619 = vpop.f32.mrf.mxu0
  %620 = vmatprep.mubr.f32.mxu0 0.0
  %621 = vmatmul.mubr.f32.gmra.mxu0 %v501
  %v622 = vpop.f32.mrf.mxu0
  %v623 = vadd.f32 %v487, %v622
  %v624 = vpop.f32.mrf.mxu0
  %625 = vmatprep.mubr.f32.mxu0 0.0
  %626 = vmatmul.mubr.f32.gmra.mxu0 %v504
  %v627 = vpop.f32.mrf.mxu0
  %v628 = vadd.f32 %v487, %v627
  %v629 = vpop.f32.mrf.mxu0
  %630 = vmatprep.mubr.f32.mxu0 0.0
  %631 = vmatmul.mubr.f32.gmra.mxu0 %v507
  %v632 = vpop.f32.mrf.mxu0
  %v633 = vadd.f32 %v487, %v632
  %v634 = vpop.f32.mrf.mxu0
  %635 = vmatprep.mubr.f32.mxu0 0.0
  %636 = vmatmul.mubr.f32.gmra.mxu0 %v510
  %v637 = vpop.f32.mrf.mxu0
  %v638 = vadd.f32 %v487, %v637
  %v639 = vpop.f32.mrf.mxu0
  %640 = vmatprep.mubr.f32.mxu0 0.0
  %641 = vmatmul.mubr.f32.gmra.mxu0 %v513
  %v642 = vpop.f32.mrf.mxu0
  %v643 = vadd.f32 %v487, %v642
  %v644 = vpop.f32.mrf.mxu0
  %645 = vmatprep.mubr.f32.mxu0 0.0
  %646 = vmatmul.mubr.f32.gmra.mxu0 %v516
  %v647 = vpop.f32.mrf.mxu0
  %v648 = vadd.f32 %v487, %v647
  %v649 = vpop.f32.mrf.mxu0
  %650 = vmatprep.mubr.f32.mxu0 0.0
  %651 = vmatmul.mubr.f32.gmra.mxu0 %v519
  %v652 = vpop.f32.mrf.mxu0
  %v653 = vadd.f32 %v487, %v652
  %v654 = vpop.f32.mrf.mxu0
  %655 = vmatprep.mubr.f32.mxu0 0.0
  %656 = vmatmul.mubr.f32.gmra.mxu0 %v522
  %v657 = vpop.f32.mrf.mxu0
  %v658 = vadd.f32 %v487, %v657
  %v659 = vpop.f32.mrf.mxu0
  %660 = vmatprep.mubr.f32.mxu0 0.0
  %661 = vmatmul.mubr.f32.gmra.mxu0 %v525
  %v662 = vpop.f32.mrf.mxu0
  %v663 = vadd.f32 %v487, %v662
  %v664 = vpop.f32.mrf.mxu0
  %665 = vmatprep.mubr.f32.mxu0 0.0
  %666 = vmatmul.mubr.f32.gmra.mxu0 %v528
  %v667 = vpop.f32.mrf.mxu0
  %v668 = vadd.f32 %v487, %v667
  %v669 = vpop.f32.mrf.mxu0
  %670 = vmatprep.mubr.f32.mxu0 0.0
  %671 = vmatmul.mubr.f32.gmra.mxu0 %v531
  %v672 = vpop.f32.mrf.mxu0
  %v673 = vadd.f32 %v487, %v672
  %v674 = vpop.f32.mrf.mxu0
  %675 = vmatprep.mubr.f32.mxu0 0.0
  %676 = vmatmul.mubr.f32.gmra.mxu0 %v534
  %v677 = vpop.f32.mrf.mxu0
  %v678 = vadd.f32 %v487, %v677
  %v679 = vpop.f32.mrf.mxu0
  %680 = vdwg.mxu0
  %v681 = vmax.f32 %v603, 0.0
  %v682 = vmax.f32 %v608, 0.0
  %v683 = vmax.f32 %v613, 0.0
  %v684 = vmax.f32 %v618, 0.0
  %v685 = vmax.f32 %v623, 0.0
  %v686 = vmax.f32 %v628, 0.0
  %v687 = vmax.f32 %v633, 0.0
  %v688 = vmax.f32 %v638, 0.0
  %v689 = vmax.f32 %v643, 0.0
  %v690 = vmax.f32 %v648, 0.0
  %v691 = vmax.f32 %v653, 0.0
  %v692 = vmax.f32 %v658, 0.0
  %v693 = vmax.f32 %v663, 0.0
  %v694 = vmax.f32 %v668, 0.0
  %v695 = vmax.f32 %v673, 0.0
  %v696 = vmax.f32 %v678, 0.0
  %v697 = vadd.f32 %v463, %v681
  %v698 = vadd.f32 %v464, %v682
  %v699 = vadd.f32 %v465, %v683
  %v700 = vadd.f32 %v466, %v684
  %v701 = vadd.f32 %v467, %v685
  %v702 = vadd.f32 %v468, %v686
  %v703 = vadd.f32 %v469, %v687
  %v704 = vadd.f32 %v470, %v688
  %v705 = vadd.f32 %v471, %v689
  %v706 = vadd.f32 %v472, %v690
  %v707 = vadd.f32 %v473, %v691
  %v708 = vadd.f32 %v474, %v692
  %v709 = vadd.f32 %v475, %v693
  %v710 = vadd.f32 %v476, %v694
  %v711 = vadd.f32 %v477, %v695
  %v712 = vadd.f32 %v478, %v696
  %v713 = vld [vmem:[%s1 + $0x50] sm:$0xff]
  %v714 = vld [vmem:[%s1 + $0x58] sm:$0xff]
  %v715 = vld [vmem:[%s1 + $0x60] sm:$0xff]
  %v716 = vld [vmem:[%s1 + $0x68] sm:$0xff]
  %v717 = vld [vmem:[%s1 + $0x93] sm:$0x1]
  %v718 = vlaneseq
  %v719 = vshrl.u32 %v718, 7
  %v720 = vsub.s32 0, %v719
  %v721 = vrot.slane %v717, %v720
  %v723 = vsel %vm253, %v697, 0
  %v726 = vsel %vm253, %v698, 0
  %v729 = vsel %vm253, %v699, 0
  %v732 = vsel %vm253, %v700, 0
  %v735 = vsel %vm253, %v701, 0
  %v738 = vsel %vm253, %v702, 0
  %v741 = vsel %vm253, %v703, 0
  %v744 = vsel %vm253, %v704, 0
  %v747 = vsel %vm253, %v705, 0
  %v750 = vsel %vm253, %v706, 0
  %v753 = vsel %vm253, %v707, 0
  %v756 = vsel %vm253, %v708, 0
  %v759 = vsel %vm253, %v709, 0
  %v762 = vsel %vm253, %v710, 0
  %v765 = vsel %vm253, %v711, 0
  %v768 = vsel %vm253, %v712, 0
  %770 = vmatprep.subr.mxu0 0.0
  %771 = vmatpush1.msra.mxu0 0.0
  %772 = vmatprep.subr.mxu0 0.0
  %773 = vmatpush1.msra.mxu0 0.0
  %774 = vmatprep.subr.mxu0 0.0
  %775 = vmatpush1.msra.mxu0 0.0
  %776 = vmatprep.subr.mxu0 0.0
  %777 = vmatpush1.msra.mxu0 0.0
  %778 = vmatprep.subr.mxu0 0.0
  %779 = vmatpush1.msra.mxu0 0.0
  %780 = vmatprep.subr.mxu0 0.0
  %781 = vmatpush1.msra.mxu0 0.0
  %782 = vmatprep.subr.mxu0 0.0
  %783 = vmatpush1.msra.mxu0 0.0
  %784 = vmatprep.subr.mxu0 0.0
  %785 = vmatpush1.msra.mxu0 0.0
  %786 = vmatprep.subr.mxu0 0.0
  %787 = vmatpush1.msra.mxu0 0.0
  %788 = vmatprep.subr.mxu0 0.0
  %789 = vmatpush1.msra.mxu0 0.0
  %790 = vmatprep.subr.mxu0 0.0
  %791 = vmatpush1.msra.mxu0 0.0
  %792 = vmatprep.subr.mxu0 0.0
  %793 = vmatpush1.msra.mxu0 0.0
  %794 = vmatprep.subr.mxu0 0.0
  %795 = vmatpush1.msra.mxu0 %v716
  %796 = vmatprep.subr.mxu0 0.0
  %797 = vmatpush1.msra.mxu0 %v715
  %798 = vmatprep.subr.mxu0 0.0
  %799 = vmatpush1.msra.mxu0 %v714
  %800 = vmatprep.subr.mxu0 0.0
  %801 = vmatpush1.msra.mxu0 %v713
  %802 = vmatprep.subr.mxu0 0.0
  %803 = vmatpush2.msra.mxu0 0.0
  %804 = vmatprep.subr.mxu0 0.0
  %805 = vmatpush2.msra.mxu0 0.0
  %806 = vmatprep.subr.mxu0 0.0
  %807 = vmatpush2.msra.mxu0 0.0
  %808 = vmatprep.subr.mxu0 0.0
  %809 = vmatpush2.msra.mxu0 0.0
  %810 = vmatprep.subr.mxu0 0.0
  %811 = vmatpush2.msra.mxu0 0.0
  %812 = vmatprep.subr.mxu0 0.0
  %813 = vmatpush2.msra.mxu0 0.0
  %814 = vmatprep.subr.mxu0 0.0
  %815 = vmatpush2.msra.mxu0 0.0
  %816 = vmatprep.subr.mxu0 0.0
  %817 = vmatpush2.msra.mxu0 0.0
  %818 = vmatprep.subr.mxu0 0.0
  %819 = vmatpush2.msra.mxu0 0.0
  %820 = vmatprep.subr.mxu0 0.0
  %821 = vmatpush2.msra.mxu0 0.0
  %822 = vmatprep.subr.mxu0 0.0
  %823 = vmatpush2.msra.mxu0 0.0
  %824 = vmatprep.subr.mxu0 0.0
  %825 = vmatpush2.msra.mxu0 0.0
  %826 = vmatprep.subr.mxu0 0.0
  %827 = vmatpush2.msra.mxu0 0.0
  %828 = vmatprep.subr.mxu0 0.0
  %829 = vmatpush2.msra.mxu0 0.0
  %830 = vmatprep.subr.mxu0 0.0
  %831 = vmatpush2.msra.mxu0 0.0
  %832 = vmatprep.subr.mxu0 0.0
  %833 = vmatpush2.msra.mxu0 0.0
  %834 = vmatprep.mubr.f32.mxu0 0.0
  %835 = vmatmul.mubr.f32.gmra.mxu0 %v723
  %v836 = vpop.f32.mrf.mxu0
  %v837 = vadd.f32 %v721, %v836
  %v838 = vpop.f32.mrf.mxu0
  %839 = vmatprep.mubr.f32.mxu0 0.0
  %840 = vmatmul.mubr.f32.gmra.mxu0 %v726
  %v841 = vpop.f32.mrf.mxu0
  %v842 = vadd.f32 %v721, %v841
  %v843 = vpop.f32.mrf.mxu0
  %844 = vmatprep.mubr.f32.mxu0 0.0
  %845 = vmatmul.mubr.f32.gmra.mxu0 %v729
  %v846 = vpop.f32.mrf.mxu0
  %v847 = vadd.f32 %v721, %v846
  %v848 = vpop.f32.mrf.mxu0
  %849 = vmatprep.mubr.f32.mxu0 0.0
  %850 = vmatmul.mubr.f32.gmra.mxu0 %v732
  %v851 = vpop.f32.mrf.mxu0
  %v852 = vadd.f32 %v721, %v851
  %v853 = vpop.f32.mrf.mxu0
  %854 = vmatprep.mubr.f32.mxu0 0.0
  %855 = vmatmul.mubr.f32.gmra.mxu0 %v735
  %v856 = vpop.f32.mrf.mxu0
  %v857 = vadd.f32 %v721, %v856
  %v858 = vpop.f32.mrf.mxu0
  %859 = vmatprep.mubr.f32.mxu0 0.0
  %860 = vmatmul.mubr.f32.gmra.mxu0 %v738
  %v861 = vpop.f32.mrf.mxu0
  %v862 = vadd.f32 %v721, %v861
  %v863 = vpop.f32.mrf.mxu0
  %864 = vmatprep.mubr.f32.mxu0 0.0
  %865 = vmatmul.mubr.f32.gmra.mxu0 %v741
  %v866 = vpop.f32.mrf.mxu0
  %v867 = vadd.f32 %v721, %v866
  %v868 = vpop.f32.mrf.mxu0
  %869 = vmatprep.mubr.f32.mxu0 0.0
  %870 = vmatmul.mubr.f32.gmra.mxu0 %v744
  %v871 = vpop.f32.mrf.mxu0
  %v872 = vadd.f32 %v721, %v871
  %v873 = vpop.f32.mrf.mxu0
  %874 = vmatprep.mubr.f32.mxu0 0.0
  %875 = vmatmul.mubr.f32.gmra.mxu0 %v747
  %v876 = vpop.f32.mrf.mxu0
  %v877 = vadd.f32 %v721, %v876
  %v878 = vpop.f32.mrf.mxu0
  %879 = vmatprep.mubr.f32.mxu0 0.0
  %880 = vmatmul.mubr.f32.gmra.mxu0 %v750
  %v881 = vpop.f32.mrf.mxu0
  %v882 = vadd.f32 %v721, %v881
  %v883 = vpop.f32.mrf.mxu0
  %884 = vmatprep.mubr.f32.mxu0 0.0
  %885 = vmatmul.mubr.f32.gmra.mxu0 %v753
  %v886 = vpop.f32.mrf.mxu0
  %v887 = vadd.f32 %v721, %v886
  %v888 = vpop.f32.mrf.mxu0
  %889 = vmatprep.mubr.f32.mxu0 0.0
  %890 = vmatmul.mubr.f32.gmra.mxu0 %v756
  %v891 = vpop.f32.mrf.mxu0
  %v892 = vadd.f32 %v721, %v891
  %v893 = vpop.f32.mrf.mxu0
  %894 = vmatprep.mubr.f32.mxu0 0.0
  %895 = vmatmul.mubr.f32.gmra.mxu0 %v759
  %v896 = vpop.f32.mrf.mxu0
  %v897 = vadd.f32 %v721, %v896
  %v898 = vpop.f32.mrf.mxu0
  %899 = vmatprep.mubr.f32.mxu0 0.0
  %900 = vmatmul.mubr.f32.gmra.mxu0 %v762
  %v901 = vpop.f32.mrf.mxu0
  %v902 = vadd.f32 %v721, %v901
  %v903 = vpop.f32.mrf.mxu0
  %904 = vmatprep.mubr.f32.mxu0 0.0
  %905 = vmatmul.mubr.f32.gmra.mxu0 %v765
  %v906 = vpop.f32.mrf.mxu0
  %v907 = vadd.f32 %v721, %v906
  %v908 = vpop.f32.mrf.mxu0
  %909 = vmatprep.mubr.f32.mxu0 0.0
  %910 = vmatmul.mubr.f32.gmra.mxu0 %v768
  %v911 = vpop.f32.mrf.mxu0
  %v912 = vadd.f32 %v721, %v911
  %v913 = vpop.f32.mrf.mxu0
  %914 = vdwg.mxu0
  %v915 = vmax.f32 %v837, 0.0
  %v916 = vmax.f32 %v842, 0.0
  %v917 = vmax.f32 %v847, 0.0
  %v918 = vmax.f32 %v852, 0.0
  %v919 = vmax.f32 %v857, 0.0
  %v920 = vmax.f32 %v862, 0.0
  %v921 = vmax.f32 %v867, 0.0
  %v922 = vmax.f32 %v872, 0.0
  %v923 = vmax.f32 %v877, 0.0
  %v924 = vmax.f32 %v882, 0.0
  %v925 = vmax.f32 %v887, 0.0
  %v926 = vmax.f32 %v892, 0.0
  %v927 = vmax.f32 %v897, 0.0
  %v928 = vmax.f32 %v902, 0.0
  %v929 = vmax.f32 %v907, 0.0
  %v930 = vmax.f32 %v912, 0.0
  %v931 = vld [vmem:[%s1 + $0x70] sm:$0xff]
  %v932 = vld [vmem:[%s1 + $0x78] sm:$0xff]
  %v933 = vld [vmem:[%s1 + $0x80] sm:$0xff]
  %v934 = vld [vmem:[%s1 + $0x88] sm:$0xff]
  %v935 = vld [vmem:[%s1 + $0x94] sm:$0x1]
  %v936 = vlaneseq
  %v937 = vshrl.u32 %v936, 7
  %v938 = vsub.s32 0, %v937
  %v939 = vrot.slane %v935, %v938
  %v941 = vsel %vm253, %v915, 0
  %v944 = vsel %vm253, %v916, 0
  %v947 = vsel %vm253, %v917, 0
  %v950 = vsel %vm253, %v918, 0
  %v953 = vsel %vm253, %v919, 0
  %v956 = vsel %vm253, %v920, 0
  %v959 = vsel %vm253, %v921, 0
  %v962 = vsel %vm253, %v922, 0
  %v965 = vsel %vm253, %v923, 0
  %v968 = vsel %vm253, %v924, 0
  %v971 = vsel %vm253, %v925, 0
  %v974 = vsel %vm253, %v926, 0
  %v977 = vsel %vm253, %v927, 0
  %v980 = vsel %vm253, %v928, 0
  %v983 = vsel %vm253, %v929, 0
  %v986 = vsel %vm253, %v930, 0
  %988 = vmatprep.subr.mxu0 0.0
  %989 = vmatpush1.msra.mxu0 0.0
  %990 = vmatprep.subr.mxu0 0.0
  %991 = vmatpush1.msra.mxu0 0.0
  %992 = vmatprep.subr.mxu0 0.0
  %993 = vmatpush1.msra.mxu0 0.0
  %994 = vmatprep.subr.mxu0 0.0
  %995 = vmatpush1.msra.mxu0 0.0
  %996 = vmatprep.subr.mxu0 0.0
  %997 = vmatpush1.msra.mxu0 0.0
  %998 = vmatprep.subr.mxu0 0.0
  %999 = vmatpush1.msra.mxu0 0.0
  %1000 = vmatprep.subr.mxu0 0.0
  %1001 = vmatpush1.msra.mxu0 0.0
  %1002 = vmatprep.subr.mxu0 0.0
  %1003 = vmatpush1.msra.mxu0 0.0
  %1004 = vmatprep.subr.mxu0 0.0
  %1005 = vmatpush1.msra.mxu0 0.0
  %1006 = vmatprep.subr.mxu0 0.0
  %1007 = vmatpush1.msra.mxu0 0.0
  %1008 = vmatprep.subr.mxu0 0.0
  %1009 = vmatpush1.msra.mxu0 0.0
  %1010 = vmatprep.subr.mxu0 0.0
  %1011 = vmatpush1.msra.mxu0 0.0
  %1012 = vmatprep.subr.mxu0 0.0
  %1013 = vmatpush1.msra.mxu0 %v934
  %1014 = vmatprep.subr.mxu0 0.0
  %1015 = vmatpush1.msra.mxu0 %v933
  %1016 = vmatprep.subr.mxu0 0.0
  %1017 = vmatpush1.msra.mxu0 %v932
  %1018 = vmatprep.subr.mxu0 0.0
  %1019 = vmatpush1.msra.mxu0 %v931
  %1020 = vmatprep.subr.mxu0 0.0
  %1021 = vmatpush2.msra.mxu0 0.0
  %1022 = vmatprep.subr.mxu0 0.0
  %1023 = vmatpush2.msra.mxu0 0.0
  %1024 = vmatprep.subr.mxu0 0.0
  %1025 = vmatpush2.msra.mxu0 0.0
  %1026 = vmatprep.subr.mxu0 0.0
  %1027 = vmatpush2.msra.mxu0 0.0
  %1028 = vmatprep.subr.mxu0 0.0
  %1029 = vmatpush2.msra.mxu0 0.0
  %1030 = vmatprep.subr.mxu0 0.0
  %1031 = vmatpush2.msra.mxu0 0.0
  %1032 = vmatprep.subr.mxu0 0.0
  %1033 = vmatpush2.msra.mxu0 0.0
  %1034 = vmatprep.subr.mxu0 0.0
  %1035 = vmatpush2.msra.mxu0 0.0
  %1036 = vmatprep.subr.mxu0 0.0
  %1037 = vmatpush2.msra.mxu0 0.0
  %1038 = vmatprep.subr.mxu0 0.0
  %1039 = vmatpush2.msra.mxu0 0.0
  %1040 = vmatprep.subr.mxu0 0.0
  %1041 = vmatpush2.msra.mxu0 0.0
  %1042 = vmatprep.subr.mxu0 0.0
  %1043 = vmatpush2.msra.mxu0 0.0
  %1044 = vmatprep.subr.mxu0 0.0
  %1045 = vmatpush2.msra.mxu0 0.0
  %1046 = vmatprep.subr.mxu0 0.0
  %1047 = vmatpush2.msra.mxu0 0.0
  %1048 = vmatprep.subr.mxu0 0.0
  %1049 = vmatpush2.msra.mxu0 0.0
  %1050 = vmatprep.subr.mxu0 0.0
  %1051 = vmatpush2.msra.mxu0 0.0
  %1052 = vmatprep.mubr.f32.mxu0 0.0
  %1053 = vmatmul.mubr.f32.gmra.mxu0 %v941
  %v1054 = vpop.f32.mrf.mxu0
  %v1055 = vadd.f32 %v939, %v1054
  %v1056 = vpop.f32.mrf.mxu0
  %1057 = vmatprep.mubr.f32.mxu0 0.0
  %1058 = vmatmul.mubr.f32.gmra.mxu0 %v944
  %v1059 = vpop.f32.mrf.mxu0
  %v1060 = vadd.f32 %v939, %v1059
  %v1061 = vpop.f32.mrf.mxu0
  %1062 = vmatprep.mubr.f32.mxu0 0.0
  %1063 = vmatmul.mubr.f32.gmra.mxu0 %v947
  %v1064 = vpop.f32.mrf.mxu0
  %v1065 = vadd.f32 %v939, %v1064
  %v1066 = vpop.f32.mrf.mxu0
  %1067 = vmatprep.mubr.f32.mxu0 0.0
  %1068 = vmatmul.mubr.f32.gmra.mxu0 %v950
  %v1069 = vpop.f32.mrf.mxu0
  %v1070 = vadd.f32 %v939, %v1069
  %v1071 = vpop.f32.mrf.mxu0
  %1072 = vmatprep.mubr.f32.mxu0 0.0
  %1073 = vmatmul.mubr.f32.gmra.mxu0 %v953
  %v1074 = vpop.f32.mrf.mxu0
  %v1075 = vadd.f32 %v939, %v1074
  %v1076 = vpop.f32.mrf.mxu0
  %1077 = vmatprep.mubr.f32.mxu0 0.0
  %1078 = vmatmul.mubr.f32.gmra.mxu0 %v956
  %v1079 = vpop.f32.mrf.mxu0
  %v1080 = vadd.f32 %v939, %v1079
  %v1081 = vpop.f32.mrf.mxu0
  %1082 = vmatprep.mubr.f32.mxu0 0.0
  %1083 = vmatmul.mubr.f32.gmra.mxu0 %v959
  %v1084 = vpop.f32.mrf.mxu0
  %v1085 = vadd.f32 %v939, %v1084
  %v1086 = vpop.f32.mrf.mxu0
  %1087 = vmatprep.mubr.f32.mxu0 0.0
  %1088 = vmatmul.mubr.f32.gmra.mxu0 %v962
  %v1089 = vpop.f32.mrf.mxu0
  %v1090 = vadd.f32 %v939, %v1089
  %v1091 = vpop.f32.mrf.mxu0
  %1092 = vmatprep.mubr.f32.mxu0 0.0
  %1093 = vmatmul.mubr.f32.gmra.mxu0 %v965
  %v1094 = vpop.f32.mrf.mxu0
  %v1095 = vadd.f32 %v939, %v1094
  %v1096 = vpop.f32.mrf.mxu0
  %1097 = vmatprep.mubr.f32.mxu0 0.0
  %1098 = vmatmul.mubr.f32.gmra.mxu0 %v968
  %v1099 = vpop.f32.mrf.mxu0
  %v1100 = vadd.f32 %v939, %v1099
  %v1101 = vpop.f32.mrf.mxu0
  %1102 = vmatprep.mubr.f32.mxu0 0.0
  %1103 = vmatmul.mubr.f32.gmra.mxu0 %v971
  %v1104 = vpop.f32.mrf.mxu0
  %v1105 = vadd.f32 %v939, %v1104
  %v1106 = vpop.f32.mrf.mxu0
  %1107 = vmatprep.mubr.f32.mxu0 0.0
  %1108 = vmatmul.mubr.f32.gmra.mxu0 %v974
  %v1109 = vpop.f32.mrf.mxu0
  %v1110 = vadd.f32 %v939, %v1109
  %v1111 = vpop.f32.mrf.mxu0
  %1112 = vmatprep.mubr.f32.mxu0 0.0
  %1113 = vmatmul.mubr.f32.gmra.mxu0 %v977
  %v1114 = vpop.f32.mrf.mxu0
  %v1115 = vadd.f32 %v939, %v1114
  %v1116 = vpop.f32.mrf.mxu0
  %1117 = vmatprep.mubr.f32.mxu0 0.0
  %1118 = vmatmul.mubr.f32.gmra.mxu0 %v980
  %v1119 = vpop.f32.mrf.mxu0
  %v1120 = vadd.f32 %v939, %v1119
  %v1121 = vpop.f32.mrf.mxu0
  %1122 = vmatprep.mubr.f32.mxu0 0.0
  %1123 = vmatmul.mubr.f32.gmra.mxu0 %v983
  %v1124 = vpop.f32.mrf.mxu0
  %v1125 = vadd.f32 %v939, %v1124
  %v1126 = vpop.f32.mrf.mxu0
  %1127 = vmatprep.mubr.f32.mxu0 0.0
  %1128 = vmatmul.mubr.f32.gmra.mxu0 %v986
  %v1129 = vpop.f32.mrf.mxu0
  %v1130 = vadd.f32 %v939, %v1129
  %v1131 = vpop.f32.mrf.mxu0
  %1132 = vdwg.mxu0
  %v1133 = vlaneseq
  %v1134 = vand.u32 %v1133, 127
  %vm1135 = vcmp.eq.s32.totalorder %v1134, 7
  %v1136 = vxor.u32 %v1055, 2147483648
  %v1137 = vxor.u32 %v1060, 2147483648
  %v1138 = vxor.u32 %v1065, 2147483648
  %v1139 = vxor.u32 %v1070, 2147483648
  %v1140 = vxor.u32 %v1075, 2147483648
  %v1141 = vxor.u32 %v1080, 2147483648
  %v1142 = vxor.u32 %v1085, 2147483648
  %v1143 = vxor.u32 %v1090, 2147483648
  %v1144 = vxor.u32 %v1095, 2147483648
  %v1145 = vxor.u32 %v1100, 2147483648
  %v1146 = vxor.u32 %v1105, 2147483648
  %v1147 = vxor.u32 %v1110, 2147483648
  %v1148 = vxor.u32 %v1115, 2147483648
  %v1149 = vxor.u32 %v1120, 2147483648
  %v1150 = vxor.u32 %v1125, 2147483648
  %v1151 = vxor.u32 %v1130, 2147483648
  %v1152 = vmul.f32 %v1136, 1.442695
  %v1153 = vpow.pop %v1152
  %v1154 = vmul.f32 %v1137, 1.442695
  %v1155 = vpow.pop %v1154
  %v1156 = vmul.f32 %v1138, 1.442695
  %v1157 = vpow.pop %v1156
  %v1158 = vmul.f32 %v1139, 1.442695
  %v1159 = vpow.pop %v1158
  %v1160 = vmul.f32 %v1140, 1.442695
  %v1161 = vpow.pop %v1160
  %v1162 = vmul.f32 %v1141, 1.442695
  %v1163 = vpow.pop %v1162
  %v1164 = vmul.f32 %v1142, 1.442695
  %v1165 = vpow.pop %v1164
  %v1166 = vmul.f32 %v1143, 1.442695
  %v1167 = vpow.pop %v1166
  %v1168 = vmul.f32 %v1144, 1.442695
  %v1169 = vpow.pop %v1168
  %v1170 = vmul.f32 %v1145, 1.442695
  %v1171 = vpow.pop %v1170
  %v1172 = vmul.f32 %v1146, 1.442695
  %v1173 = vpow.pop %v1172
  %v1174 = vmul.f32 %v1147, 1.442695
  %v1175 = vpow.pop %v1174
  %v1176 = vmul.f32 %v1148, 1.442695
  %v1177 = vpow.pop %v1176
  %v1178 = vmul.f32 %v1149, 1.442695
  %v1179 = vpow.pop %v1178
  %v1180 = vmul.f32 %v1150, 1.442695
  %v1181 = vpow.pop %v1180
  %v1182 = vmul.f32 %v1151, 1.442695
  %v1183 = vpow.pop %v1182
  %v1184 = vadd.f32 %v1153, 1.0
  %v1185 = vadd.f32 %v1155, 1.0
  %v1186 = vadd.f32 %v1157, 1.0
  %v1187 = vadd.f32 %v1159, 1.0
  %v1188 = vadd.f32 %v1161, 1.0
  %v1189 = vadd.f32 %v1163, 1.0
  %v1190 = vadd.f32 %v1165, 1.0
  %v1191 = vadd.f32 %v1167, 1.0
  %v1192 = vadd.f32 %v1169, 1.0
  %v1193 = vadd.f32 %v1171, 1.0
  %v1194 = vadd.f32 %v1173, 1.0
  %v1195 = vadd.f32 %v1175, 1.0
  %v1196 = vadd.f32 %v1177, 1.0
  %v1197 = vadd.f32 %v1179, 1.0
  %v1198 = vadd.f32 %v1181, 1.0
  %v1199 = vadd.f32 %v1183, 1.0
  %v1200 = vrcp.pop %v1184
  %v1201 = vmul.f32 1.0, %v1200
  %v1202 = vrcp.pop %v1185
  %v1203 = vmul.f32 1.0, %v1202
  %v1204 = vrcp.pop %v1186
  %v1205 = vmul.f32 1.0, %v1204
  %v1206 = vrcp.pop %v1187
  %v1207 = vmul.f32 1.0, %v1206
  %v1208 = vrcp.pop %v1188
  %v1209 = vmul.f32 1.0, %v1208
  %v1210 = vrcp.pop %v1189
  %v1211 = vmul.f32 1.0, %v1210
  %v1212 = vrcp.pop %v1190
  %v1213 = vmul.f32 1.0, %v1212
  %v1214 = vrcp.pop %v1191
  %v1215 = vmul.f32 1.0, %v1214
  %v1216 = vrcp.pop %v1192
  %v1217 = vmul.f32 1.0, %v1216
  %v1218 = vrcp.pop %v1193
  %v1219 = vmul.f32 1.0, %v1218
  %v1220 = vrcp.pop %v1194
  %v1221 = vmul.f32 1.0, %v1220
  %v1222 = vrcp.pop %v1195
  %v1223 = vmul.f32 1.0, %v1222
  %v1224 = vrcp.pop %v1196
  %v1225 = vmul.f32 1.0, %v1224
  %v1226 = vrcp.pop %v1197
  %v1227 = vmul.f32 1.0, %v1226
  %v1228 = vrcp.pop %v1198
  %v1229 = vmul.f32 1.0, %v1228
  %v1230 = vrcp.pop %v1199
  %v1231 = vmul.f32 1.0, %v1230
  %v1232 = vmul.f32 %v1201, 100.0
  %v1233 = vmul.f32 %v1203, 100.0
  %v1234 = vmul.f32 %v1205, 100.0
  %v1235 = vmul.f32 %v1207, 100.0
  %v1236 = vmul.f32 %v1209, 100.0
  %v1237 = vmul.f32 %v1211, 100.0
  %v1238 = vmul.f32 %v1213, 100.0
  %v1239 = vmul.f32 %v1215, 100.0
  %v1240 = vmul.f32 %v1217, 100.0
  %v1241 = vmul.f32 %v1219, 100.0
  %v1242 = vmul.f32 %v1221, 100.0
  %v1243 = vmul.f32 %v1223, 100.0
  %v1244 = vmul.f32 %v1225, 100.0
  %v1245 = vmul.f32 %v1227, 100.0
  %v1246 = vmul.f32 %v1229, 100.0
  %v1247 = vmul.f32 %v1231, 100.0
  %v1248 = vsel %vm1135, %v1232, %v1055
  %v1249 = vsel %vm1135, %v1233, %v1060
  %v1250 = vsel %vm1135, %v1234, %v1065
  %v1251 = vsel %vm1135, %v1235, %v1070
  %v1252 = vsel %vm1135, %v1236, %v1075
  %v1253 = vsel %vm1135, %v1237, %v1080
  %v1254 = vsel %vm1135, %v1238, %v1085
  %v1255 = vsel %vm1135, %v1239, %v1090
  %v1256 = vsel %vm1135, %v1240, %v1095
  %v1257 = vsel %vm1135, %v1241, %v1100
  %v1258 = vsel %vm1135, %v1242, %v1105
  %v1259 = vsel %vm1135, %v1243, %v1110
  %v1260 = vsel %vm1135, %v1244, %v1115
  %v1261 = vsel %vm1135, %v1245, %v1120
  %v1262 = vsel %vm1135, %v1246, %v1125
  %v1263 = vsel %vm1135, %v1247, %v1130
  %1280 = vrot.lane.b32.xlu0 %v1248, 32
  %v1281 = vpop.permute.xlu0 %1280
  %1282 = vrot.lane.b32.xlu0 %v1249, 32
  %v1283 = vpop.permute.xlu0 %1282
  %1284 = vrot.lane.b32.xlu0 %v1250, 32
  %v1285 = vpop.permute.xlu0 %1284
  %1286 = vrot.lane.b32.xlu0 %v1251, 32
  %v1287 = vpop.permute.xlu0 %1286
  %1288 = vrot.lane.b32.xlu0 %v1252, 32
  %v1289 = vpop.permute.xlu0 %1288
  %1290 = vrot.lane.b32.xlu0 %v1253, 32
  %v1291 = vpop.permute.xlu0 %1290
  %1292 = vrot.lane.b32.xlu0 %v1254, 32
  %v1293 = vpop.permute.xlu0 %1292
  %1294 = vrot.lane.b32.xlu0 %v1255, 32
  %v1295 = vpop.permute.xlu0 %1294
  %1296 = vrot.lane.b32.xlu0 %v1256, 32
  %v1297 = vpop.permute.xlu0 %1296
  %1298 = vrot.lane.b32.xlu0 %v1257, 32
  %v1299 = vpop.permute.xlu0 %1298
  %1300 = vrot.lane.b32.xlu0 %v1258, 32
  %v1301 = vpop.permute.xlu0 %1300
  %1302 = vrot.lane.b32.xlu0 %v1259, 32
  %v1303 = vpop.permute.xlu0 %1302
  %1304 = vrot.lane.b32.xlu0 %v1260, 32
  %v1305 = vpop.permute.xlu0 %1304
  %1306 = vrot.lane.b32.xlu0 %v1261, 32
  %v1307 = vpop.permute.xlu0 %1306
  %1308 = vrot.lane.b32.xlu0 %v1262, 32
  %v1309 = vpop.permute.xlu0 %1308
  %1310 = vrot.lane.b32.xlu0 %v1263, 32
  %v1311 = vpop.permute.xlu0 %1310
  %v1328 = vsel %vm253, %v697, %v1281
  %v1329 = vsel %vm253, %v698, %v1283
  %v1330 = vsel %vm253, %v699, %v1285
  %v1331 = vsel %vm253, %v700, %v1287
  %v1332 = vsel %vm253, %v701, %v1289
  %v1333 = vsel %vm253, %v702, %v1291
  %v1334 = vsel %vm253, %v703, %v1293
  %v1335 = vsel %vm253, %v704, %v1295
  %v1336 = vsel %vm253, %v705, %v1297
  %v1337 = vsel %vm253, %v706, %v1299
  %v1338 = vsel %vm253, %v707, %v1301
  %v1339 = vsel %vm253, %v708, %v1303
  %v1340 = vsel %vm253, %v709, %v1305
  %v1341 = vsel %vm253, %v710, %v1307
  %v1342 = vsel %vm253, %v711, %v1309
  %v1343 = vsel %vm253, %v712, %v1311
  %vm1344 = vcmask 326656
  %1345 = vst.msk [vmem:[%s2] sm:$0xff] %vm1344, %v1328
  %1346 = vst.msk [vmem:[%s2 + $0x8] sm:$0xff] %vm1344, %v1329
  %1347 = vst.msk [vmem:[%s2 + $0x10] sm:$0xff] %vm1344, %v1330
  %1348 = vst.msk [vmem:[%s2 + $0x18] sm:$0xff] %vm1344, %v1331
  %1349 = vst.msk [vmem:[%s2 + $0x20] sm:$0xff] %vm1344, %v1332
  %1350 = vst.msk [vmem:[%s2 + $0x28] sm:$0xff] %vm1344, %v1333
  %1351 = vst.msk [vmem:[%s2 + $0x30] sm:$0xff] %vm1344, %v1334
  %1352 = vst.msk [vmem:[%s2 + $0x38] sm:$0xff] %vm1344, %v1335
  %1353 = vst.msk [vmem:[%s2 + $0x40] sm:$0xff] %vm1344, %v1336
  %1354 = vst.msk [vmem:[%s2 + $0x48] sm:$0xff] %vm1344, %v1337
  %1355 = vst.msk [vmem:[%s2 + $0x50] sm:$0xff] %vm1344, %v1338
  %1356 = vst.msk [vmem:[%s2 + $0x58] sm:$0xff] %vm1344, %v1339
  %1357 = vst.msk [vmem:[%s2 + $0x60] sm:$0xff] %vm1344, %v1340
  %1358 = vst.msk [vmem:[%s2 + $0x68] sm:$0xff] %vm1344, %v1341
  %1359 = vst.msk [vmem:[%s2 + $0x70] sm:$0xff] %vm1344, %v1342
  %1360 = vst.msk [vmem:[%s2 + $0x78] sm:$0xff] %vm1344, %v1343
  // Predicated region
  $region10: #{wallet_graphsage_forward.1} parent=0 // pred_check
    _
  $region11: #{wallet_graphsage_forward.1} parent=0 // pred_check_branch
    %1362 = sbr.rel (0) target = $region13
  $region12: #{wallet_graphsage_forward.1} parent=0 // pred_region
    _
  $region13: #{wallet_graphsage_forward.1} parent=0 // pred_fallthru
    _
  // Predicated region
  $region14: #{wallet_graphsage_forward.1} parent=0 // pred_check
    _
  $region15: #{wallet_graphsage_forward.1} parent=0 // pred_check_branch
    %1364 = sbr.rel (0) target = $region17
  $region16: #{wallet_graphsage_forward.1} parent=0 // pred_region
    _
  $region17: #{wallet_graphsage_forward.1} parent=0 // pred_fallthru
    _

</llo_original>
